<compile_context>
chip_gen: v6e
topology: v6e:2x2x1
jax: 0.10.0
libtpu: 0.0.40
codegen_flags: <defaults>
</compile_context>

<pallas_src>
import jax
import jax.numpy as jnp
from jax.experimental import pallas as pl
from jax.experimental.pallas import tpu as pltpu


# ----------------------------------------------------------------------------
# Pallas kernel: one (C, T) spatial tile of one batch element
# ----------------------------------------------------------------------------
def _se_cam_kernel(x_ref, xse_ref, extra_ref,
                   w1e_ref, b1_ref, w2e_ref, b2_ref,
                   w1x_ref, w2x_ref, out_ref):
    extra = extra_ref[...]                                     # (8, T) f32
    xse = xse_ref[...].astype(jnp.bfloat16)                    # cast in-kernel (hides under DMA)

    # conv_reduce: extra part (f32, K=8 tiny) + feature part (bf16 MXU, f32 acc) + ReLU
    z1 = jnp.dot(w1e_ref[...], extra,
                 preferred_element_type=jnp.float32) + b1_ref[...]          # (C, T) f32
    z1 = z1 + jnp.dot(w1x_ref[...], xse, preferred_element_type=jnp.float32)
    z1 = jnp.maximum(z1, 0.0)

    # conv_expand: extra part + feature part
    z2 = jnp.dot(w2e_ref[...], extra,
                 preferred_element_type=jnp.float32) + b2_ref[...]          # (C, T) f32
    z2 = z2 + jnp.dot(w2x_ref[...], z1.astype(jnp.bfloat16),
                      preferred_element_type=jnp.float32)

    # gate = sigmoid, multiply against x (f32 math, stored in x's dtype)
    out_ref[...] = (x_ref[...].astype(jnp.float32)
                    * jax.nn.sigmoid(z2)).astype(out_ref.dtype)


# ----------------------------------------------------------------------------
# CAM coordinate channels (AddCAMCoords, channels_first, coord_maps=centered_coord
# =norm_coord_maps=fov_maps=True, with_r=bord_dist=False).  Channel order matches
# the PyTorch concat order:
#   [norm_xx, norm_yy, fov_xx, fov_yy, cent_xx/scale, cent_yy/scale, xx, yy]
# TODO(synk): kept as plain-JAX glue (arctan + nearest-resize have no guaranteed
# in-kernel Mosaic lowering); only the hot matmul/activation/gate path is Pallas.
# ----------------------------------------------------------------------------
def make_extra_channels(K, h, w, H, W, scale_centered_coord=320.0):
    fx, fy, cx, cy = K[0, 0], K[1, 1], K[0, 2], K[1, 2]
    xx = jnp.broadcast_to(jnp.arange(w, dtype=jnp.float32)[None, :], (h, w))  # col index
    yy = jnp.broadcast_to(jnp.arange(h, dtype=jnp.float32)[:, None], (h, w))  # row index

    norm_xx = xx / (w - 1) * 2.0 - 1.0
    norm_yy = yy / (h - 1) * 2.0 - 1.0
    cent_xx = xx - cx + 0.5
    cent_yy = yy - cy + 0.5
    fov_xx = jnp.arctan(cent_xx / fx)
    fov_yy = jnp.arctan(cent_yy / fy)

    extra = jnp.stack([norm_xx, norm_yy, fov_xx, fov_yy,
                       cent_xx / scale_centered_coord,
                       cent_yy / scale_centered_coord,
                       xx, yy], axis=0)                       # (8, h, w)

    # F.interpolate(mode='nearest') to the feature-map size (identity when h==H, w==W)
    rows = (jnp.arange(H) * h // H).astype(jnp.int32)
    cols = (jnp.arange(W) * w // W).astype(jnp.int32)
    extra = extra[:, rows, :][:, :, cols]                     # (8, H, W)
    return extra


# ----------------------------------------------------------------------------
# Generation-aware tile / VMEM budgeting
# ----------------------------------------------------------------------------
def _pick_tile_and_vmem(C, HW, x_itemsize, xse_itemsize, out_itemsize):
    try:
        vmem_cap = int(pltpu.get_tpu_info().vmem_capacity_bytes)
    except Exception:
        vmem_cap = 64 << 20          # conservative fallback (v7x per-TC VMEM)
    budget = min(int(vmem_cap * 0.6), 80 << 20)

    # per spatial element (lane column):
    #   double-buffered I/O tiles: x + x_se + extra(8ch f32) + out
    io_per = 2 * (x_itemsize * C + xse_itemsize * C + 4 * 8 + out_itemsize * C)
    #   in-kernel temporaries (z1/z2/sigmoid f32 + bf16 casts), generous
    tmp_per = 20 * C + 32
    per_elem = io_per + tmp_per
    # resident weights (assume the pipeliner double-buffers them)
    weight_bytes = 2 * (2 * C * C * 2 + 2 * C * 8 * 4 + 2 * C * 4)

    t_fit = max(128, (budget - weight_bytes) // max(per_elem, 1))
    T = int(min(2048, (t_fit // 128) * 128, pl.cdiv(HW, 128) * 128))
    T = max(T, 128)

    vmem_limit = T * per_elem + weight_bytes + (2 << 20)
    vmem_limit = int(min(max(vmem_limit, 16 << 20), vmem_cap))
    return T, vmem_limit


# ----------------------------------------------------------------------------
# Wrapper: builds extra channels, splits weights, launches the Pallas kernel
# ----------------------------------------------------------------------------
def se_layer_cam_conv(x, x_se, all_intrinsics, h, w, params):
    N, C, H, W = x.shape
    assert x_se.shape == x.shape, "SE gating requires x_se with the same shape as x"
    HW = H * W

    # extra channels stay f32 (raw / centered coords are too large for bf16)
    extra = jax.vmap(lambda K: make_extra_channels(K, h, w, H, W))(all_intrinsics)
    extra = extra.reshape(N, 8, HW).astype(jnp.float32)

    w1, b1, w2, b2 = params            # w*: (C, C+8), b*: (C,)
    # split each 1x1 conv weight into [extra cols | feature cols]
    w1e = w1[:, :8].astype(jnp.float32)                       # (C, 8)
    w2e = w2[:, :8].astype(jnp.float32)                       # (C, 8)
    b1c = b1.reshape(C, 1).astype(jnp.float32)
    b2c = b2.reshape(C, 1).astype(jnp.float32)
    w1x = w1[:, 8:].astype(jnp.bfloat16)                      # (C, C)
    w2x = w2[:, 8:].astype(jnp.bfloat16)                      # (C, C)

    # free (contiguous) reshapes — no extra HBM pass, no pre-casting, no padding
    xf = x.reshape(N, C, HW)
    xsef = x_se.reshape(N, C, HW)

    T, vmem_limit = _pick_tile_and_vmem(
        C, HW, x.dtype.itemsize, x_se.dtype.itemsize, x.dtype.itemsize)
    num_t = pl.cdiv(HW, T)             # ragged tail tile handled by Pallas

    # TODO(synk): if production C is tiny (<8), pack several batch elements per
    # tile to fill the sublane axis; kept per-(batch, spatial-tile) for large C.
    out = pl.pallas_call(
        _se_cam_kernel,
        out_shape=jax.ShapeDtypeStruct((N, C, HW), x.dtype),
        grid_spec=pltpu.PrefetchScalarGridSpec(
            num_scalar_prefetch=0,
            grid=(num_t, N),                                     # spatial axis first (v7x 2-TC split)
            in_specs=[
                pl.BlockSpec((None, C, T), lambda t, n: (n, 0, t)),   # x     (native dtype)
                pl.BlockSpec((None, C, T), lambda t, n: (n, 0, t)),   # x_se  (native dtype)
                pl.BlockSpec((None, 8, T), lambda t, n: (n, 0, t)),   # extra (f32)
                pl.BlockSpec((C, 8), lambda t, n: (0, 0)),            # w1 extra cols
                pl.BlockSpec((C, 1), lambda t, n: (0, 0)),            # b1
                pl.BlockSpec((C, 8), lambda t, n: (0, 0)),            # w2 extra cols
                pl.BlockSpec((C, 1), lambda t, n: (0, 0)),            # b2
                pl.BlockSpec((C, C), lambda t, n: (0, 0)),            # w1 feature cols (bf16)
                pl.BlockSpec((C, C), lambda t, n: (0, 0)),            # w2 feature cols (bf16)
            ],
            out_specs=pl.BlockSpec((None, C, T), lambda t, n: (n, 0, t)),
        ),
        compiler_params=pltpu.CompilerParams(
            dimension_semantics=("parallel", "parallel"),
            vmem_limit_bytes=vmem_limit,
        ),
    )(xf, xsef, extra, w1e, b1c, w2e, b2c, w1x, w2x)

    return out.reshape(N, C, H, W)


# ----------------------------------------------------------------------------
# Pure-JAX f32 reference (mirrors the PyTorch forward, per-idx loop)
# ----------------------------------------------------------------------------
def reference(x, x_se, all_intrinsics, h, w, params):
    N, C, H, W = x.shape
    w1, b1, w2, b2 = params
    outs = []
    for i in range(N):
        extra = make_extra_channels(all_intrinsics[i], h, w, H, W)       # (8,H,W)
        cat1 = jnp.concatenate([extra, x_se[i]], axis=0)                 # (C+8,H,W)
        z1 = jnp.einsum('oc,chw->ohw', w1, cat1) + b1[:, None, None]
        z1 = jnp.maximum(z1, 0.0)
        cat2 = jnp.concatenate([extra, z1], axis=0)
        z2 = jnp.einsum('oc,chw->ohw', w2, cat2) + b2[:, None, None]
        outs.append(z2)
    x_se_out = jnp.stack(outs, axis=0)
    return x * jax.nn.sigmoid(x_se_out)


if __name__ == "__main__":
    key = jax.random.PRNGKey(0)
    N, C, H, W = 2, 4, 16, 16          # batch(cameras), channels, feature-map size
    h, w = 16, 16                      # image height/width passed to CAMConv

    k1, k2, k3, k4, k5, k6 = jax.random.split(key, 6)
    x = jax.random.normal(k1, (N, C, H, W), jnp.float32)
    x_se = jax.random.normal(k2, (N, C, H, W), jnp.float32)

    # per-camera 3x3 intrinsic matrices (fx, fy, cx, cy)
    fx = 10.0 + jax.random.uniform(k3, (N,), jnp.float32)
    fy = 10.0 + jax.random.uniform(k4, (N,), jnp.float32)
    K = jnp.zeros((N, 3, 3), jnp.float32)
    K = K.at[:, 0, 0].set(fx).at[:, 1, 1].set(fy)
    K = K.at[:, 0, 2].set(w / 2.0).at[:, 1, 2].set(h / 2.0).at[:, 2, 2].set(1.0)

    # deterministic 1x1 conv params: weight (C, C+8), bias (C,)
    w1 = 0.1 * jax.random.normal(k5, (C, C + 8), jnp.float32)
    b1 = 0.01 * jnp.arange(C, dtype=jnp.float32)
    w2 = 0.1 * jax.random.normal(k6, (C, C + 8), jnp.float32)
    b2 = 0.01 * jnp.arange(C, dtype=jnp.float32) - 0.02
    params = (w1, b1, w2, b2)

    out = se_layer_cam_conv(x, x_se, K, h, w, params)
    out = jax.block_until_ready(out)

    ref = reference(x, x_se, K, h, w, params)
    assert out.shape == (N, C, H, W)
    # only the CxC feature matmuls run in bf16 (f32 accumulation, f32 extra/bias path)
    assert jnp.allclose(out, ref, rtol=2e-2, atol=2e-2), float(jnp.max(jnp.abs(out - ref)))
    print("KERNEL_OK")
</pallas_src>

<mosaic_0001>
module attributes {stable_mosaic.version = 11 : i64} {
  func.func @_se_cam_kernel(%arg0: i32, %arg1: i32, %arg2: memref<1x4x256xf32, #tpu.memory_space<vmem>>, %arg3: memref<1x4x256xf32, #tpu.memory_space<vmem>>, %arg4: memref<1x8x256xf32, #tpu.memory_space<vmem>>, %arg5: memref<4x8xf32, #tpu.memory_space<vmem>>, %arg6: memref<4x1xf32, #tpu.memory_space<vmem>>, %arg7: memref<4x8xf32, #tpu.memory_space<vmem>>, %arg8: memref<4x1xf32, #tpu.memory_space<vmem>>, %arg9: memref<4x4xbf16, #tpu.memory_space<vmem>>, %arg10: memref<4x4xbf16, #tpu.memory_space<vmem>>, %arg11: memref<1x4x256xf32, #tpu.memory_space<vmem>>) attributes {dimension_semantics = [#tpu.dimension_semantics<parallel>, #tpu.dimension_semantics<parallel>], iteration_bounds = array<i64: 1, 2>, scalar_prefetch = 0 : i64, scratch_operands = 0 : i64, tpu.core_type = #tpu.core_type<tc>, window_params = [{transform_indices = @transform_0, window_bounds = array<i64: 1, 4, 256>}, {transform_indices = @transform_1, window_bounds = array<i64: 1, 4, 256>}, {transform_indices = @transform_2, window_bounds = array<i64: 1, 8, 256>}, {pipeline_mode = #tpu.pipeline_mode<synchronous>, transform_indices = @transform_3, window_bounds = array<i64: 4, 8>}, {pipeline_mode = #tpu.pipeline_mode<synchronous>, transform_indices = @transform_4, window_bounds = array<i64: 4, 1>}, {pipeline_mode = #tpu.pipeline_mode<synchronous>, transform_indices = @transform_5, window_bounds = array<i64: 4, 8>}, {pipeline_mode = #tpu.pipeline_mode<synchronous>, transform_indices = @transform_6, window_bounds = array<i64: 4, 1>}, {pipeline_mode = #tpu.pipeline_mode<synchronous>, transform_indices = @transform_7, window_bounds = array<i64: 4, 4>}, {pipeline_mode = #tpu.pipeline_mode<synchronous>, transform_indices = @transform_8, window_bounds = array<i64: 4, 4>}, {transform_indices = @transform_9, window_bounds = array<i64: 1, 4, 256>}]} {
    %c0 = arith.constant 0 : index
    %c0_0 = arith.constant 0 : index
    %c0_1 = arith.constant 0 : index
    %0 = vector.load %arg4[%c0, %c0_0, %c0_1] : memref<1x8x256xf32, #tpu.memory_space<vmem>>, vector<1x8x256xf32>
    %1 = vector.shape_cast %0 : vector<1x8x256xf32> to vector<8x256xf32>
    %c0_2 = arith.constant 0 : index
    %c0_3 = arith.constant 0 : index
    %c0_4 = arith.constant 0 : index
    %2 = vector.load %arg3[%c0_2, %c0_3, %c0_4] : memref<1x4x256xf32, #tpu.memory_space<vmem>>, vector<1x4x256xf32>
    %3 = vector.shape_cast %2 : vector<1x4x256xf32> to vector<4x256xf32>
    %4 = arith.truncf %3 : vector<4x256xf32> to vector<4x256xbf16>
    %c0_5 = arith.constant 0 : index
    %c0_6 = arith.constant 0 : index
    %5 = vector.load %arg5[%c0_5, %c0_6] : memref<4x8xf32, #tpu.memory_space<vmem>>, vector<4x8xf32>
    %cst = arith.constant dense<0.000000e+00> : vector<4x256xf32>
    %6 = tpu.matmul %5, %1, %cst {dimension_numbers = #tpu.dot_dimension_numbers<[1], [0], [0], [1], [0, 0, 1, 1], [], []>} : vector<4x8xf32>, vector<8x256xf32>, vector<4x256xf32> -> vector<4x256xf32>
    %c0_7 = arith.constant 0 : index
    %c0_8 = arith.constant 0 : index
    %7 = vector.load %arg6[%c0_7, %c0_8] : memref<4x1xf32, #tpu.memory_space<vmem>>, vector<4x1xf32>
    %8 = vector.broadcast %7 : vector<4x1xf32> to vector<4x256xf32>
    %9 = arith.addf %6, %8 : vector<4x256xf32>
    %c0_9 = arith.constant 0 : index
    %c0_10 = arith.constant 0 : index
    %10 = vector.load %arg9[%c0_9, %c0_10] : memref<4x4xbf16, #tpu.memory_space<vmem>>, vector<4x4xbf16>
    %cst_11 = arith.constant dense<0.000000e+00> : vector<4x256xf32>
    %11 = tpu.matmul %10, %4, %cst_11 {dimension_numbers = #tpu.dot_dimension_numbers<[1], [0], [0], [1], [0, 0, 1, 1], [], []>} : vector<4x4xbf16>, vector<4x256xbf16>, vector<4x256xf32> -> vector<4x256xf32>
    %12 = arith.addf %9, %11 : vector<4x256xf32>
    %cst_12 = arith.constant 0.000000e+00 : f32
    %13 = vector.broadcast %cst_12 : f32 to vector<4x256xf32>
    %14 = arith.maximumf %12, %13 : vector<4x256xf32>
    %c0_13 = arith.constant 0 : index
    %c0_14 = arith.constant 0 : index
    %15 = vector.load %arg7[%c0_13, %c0_14] : memref<4x8xf32, #tpu.memory_space<vmem>>, vector<4x8xf32>
    %cst_15 = arith.constant dense<0.000000e+00> : vector<4x256xf32>
    %16 = tpu.matmul %15, %1, %cst_15 {dimension_numbers = #tpu.dot_dimension_numbers<[1], [0], [0], [1], [0, 0, 1, 1], [], []>} : vector<4x8xf32>, vector<8x256xf32>, vector<4x256xf32> -> vector<4x256xf32>
    %c0_16 = arith.constant 0 : index
    %c0_17 = arith.constant 0 : index
    %17 = vector.load %arg8[%c0_16, %c0_17] : memref<4x1xf32, #tpu.memory_space<vmem>>, vector<4x1xf32>
    %18 = vector.broadcast %17 : vector<4x1xf32> to vector<4x256xf32>
    %19 = arith.addf %16, %18 : vector<4x256xf32>
    %c0_18 = arith.constant 0 : index
    %c0_19 = arith.constant 0 : index
    %20 = vector.load %arg10[%c0_18, %c0_19] : memref<4x4xbf16, #tpu.memory_space<vmem>>, vector<4x4xbf16>
    %21 = arith.truncf %14 : vector<4x256xf32> to vector<4x256xbf16>
    %cst_20 = arith.constant dense<0.000000e+00> : vector<4x256xf32>
    %22 = tpu.matmul %20, %21, %cst_20 {dimension_numbers = #tpu.dot_dimension_numbers<[1], [0], [0], [1], [0, 0, 1, 1], [], []>} : vector<4x4xbf16>, vector<4x256xbf16>, vector<4x256xf32> -> vector<4x256xf32>
    %23 = arith.addf %19, %22 : vector<4x256xf32>
    %c0_21 = arith.constant 0 : index
    %c0_22 = arith.constant 0 : index
    %c0_23 = arith.constant 0 : index
    %24 = vector.load %arg2[%c0_21, %c0_22, %c0_23] : memref<1x4x256xf32, #tpu.memory_space<vmem>>, vector<1x4x256xf32>
    %25 = vector.shape_cast %24 : vector<1x4x256xf32> to vector<4x256xf32>
    %26 = arith.negf %23 : vector<4x256xf32>
    %27 = math.exp %26 : vector<4x256xf32>
    %cst_24 = arith.constant 1.000000e+00 : f32
    %28 = vector.broadcast %cst_24 : f32 to vector<4x256xf32>
    %29 = arith.addf %28, %27 : vector<4x256xf32>
    %30 = arith.divf %28, %29 : vector<4x256xf32>
    %31 = arith.mulf %25, %30 : vector<4x256xf32>
    %c0_25 = arith.constant 0 : index
    %c0_26 = arith.constant 0 : index
    %c0_27 = arith.constant 0 : index
    %32 = vector.load %arg11[%c0_25, %c0_26, %c0_27] : memref<1x4x256xf32, #tpu.memory_space<vmem>>, vector<1x4x256xf32>
    %33 = vector.shape_cast %32 : vector<1x4x256xf32> to vector<4x256xf32>
    %34 = vector.shape_cast %31 : vector<4x256xf32> to vector<1x4x256xf32>
    tpu.vector_store %arg11[%c0_25, %c0_26, %c0_27], %34 {strides = array<i32>} : memref<1x4x256xf32, #tpu.memory_space<vmem>>, vector<1x4x256xf32>,
    return
  }
  func.func @transform_0(%arg0: i32, %arg1: i32) -> (i32, i32, i32) {
    %c0_i32 = arith.constant 0 : i32
    %c0_i32_0 = arith.constant 0 : i32
    return %arg1, %c0_i32, %arg0 : i32, i32, i32
  }
  func.func @transform_1(%arg0: i32, %arg1: i32) -> (i32, i32, i32) {
    %c0_i32 = arith.constant 0 : i32
    %c0_i32_0 = arith.constant 0 : i32
    return %arg1, %c0_i32, %arg0 : i32, i32, i32
  }
  func.func @transform_2(%arg0: i32, %arg1: i32) -> (i32, i32, i32) {
    %c0_i32 = arith.constant 0 : i32
    %c0_i32_0 = arith.constant 0 : i32
    return %arg1, %c0_i32, %arg0 : i32, i32, i32
  }
  func.func @transform_3(%arg0: i32, %arg1: i32) -> (i32, i32) {
    %c0_i32 = arith.constant 0 : i32
    %c0_i32_0 = arith.constant 0 : i32
    %c0_i32_1 = arith.constant 0 : i32
    return %c0_i32, %c0_i32_0 : i32, i32
  }
  func.func @transform_4(%arg0: i32, %arg1: i32) -> (i32, i32) {
    %c0_i32 = arith.constant 0 : i32
    %c0_i32_0 = arith.constant 0 : i32
    %c0_i32_1 = arith.constant 0 : i32
    return %c0_i32, %c0_i32_0 : i32, i32
  }
  func.func @transform_5(%arg0: i32, %arg1: i32) -> (i32, i32) {
    %c0_i32 = arith.constant 0 : i32
    %c0_i32_0 = arith.constant 0 : i32
    %c0_i32_1 = arith.constant 0 : i32
    return %c0_i32, %c0_i32_0 : i32, i32
  }
  func.func @transform_6(%arg0: i32, %arg1: i32) -> (i32, i32) {
    %c0_i32 = arith.constant 0 : i32
    %c0_i32_0 = arith.constant 0 : i32
    %c0_i32_1 = arith.constant 0 : i32
    return %c0_i32, %c0_i32_0 : i32, i32
  }
  func.func @transform_7(%arg0: i32, %arg1: i32) -> (i32, i32) {
    %c0_i32 = arith.constant 0 : i32
    %c0_i32_0 = arith.constant 0 : i32
    %c0_i32_1 = arith.constant 0 : i32
    return %c0_i32, %c0_i32_0 : i32, i32
  }
  func.func @transform_8(%arg0: i32, %arg1: i32) -> (i32, i32) {
    %c0_i32 = arith.constant 0 : i32
    %c0_i32_0 = arith.constant 0 : i32
    %c0_i32_1 = arith.constant 0 : i32
    return %c0_i32, %c0_i32_0 : i32, i32
  }
  func.func @transform_9(%arg0: i32, %arg1: i32) -> (i32, i32, i32) {
    %c0_i32 = arith.constant 0 : i32
    %c0_i32_0 = arith.constant 0 : i32
    return %arg1, %c0_i32, %arg0 : i32, i32, i32
  }
}

</mosaic_0001>

<llo_original>
// kernel: tpu_custom_call.1
$region0: #{tpu_custom_call.1}
  #allocation0 [shape = 'u32[]', space=smem, size = 0x4, offset = 0x4, fixed_abs, tag = 'smem constant byte address 0x4 - core index']
  #allocation1 [shape = 'u32[144,128]{1,0:T(1,128)}', space=vmem, size = 0x12000, scoped, tag = 'internal scratch']
  %s0 = inlined_call_operand.hbm [shape: f32[2,4,256], index: 0, kind: input, shape index: {}]
  %s1 = inlined_call_operand.hbm [shape: f32[2,4,256], index: 1, kind: input, shape index: {}]
  %s2 = inlined_call_operand.hbm [shape: f32[2,8,256], index: 2, kind: input, shape index: {}]
  %s3 = inlined_call_operand.vmem [shape: f32[4,8], index: 3, kind: input, shape index: {}]
  %s4 = inlined_call_operand.vmem [shape: f32[4,1], index: 4, kind: input, shape index: {}]
  %s5 = inlined_call_operand.vmem [shape: f32[4,8], index: 5, kind: input, shape index: {}]
  %s6 = inlined_call_operand.vmem [shape: f32[4,1], index: 6, kind: input, shape index: {}]
  %s7 = inlined_call_operand.vmem [shape: bf16[4,4], index: 7, kind: input, shape index: {}]
  %s8 = inlined_call_operand.vmem [shape: bf16[4,4], index: 8, kind: input, shape index: {}]
  %s9 = inlined_call_operand.hbm [shape: f32[2,4,256], index: 9, kind: output, shape index: {}]
  %s10 = sld [smem:[#allocation0]]
  $region81: #{tpu_custom_call.1} parent=0
    _
  %s12 = ssub.s32 1, %s10
  %s13 = scalar_select 0, %s12, %s10
  $region1: #{tpu_custom_call.1} parent=0
    #allocation2 [shape = 'u8[8192]{0}', space=vmem, size = 0x2000, scoped, tag = 'input window, operand 0']
    #allocation3 [shape = 's32[2]{0}', space=sflag, size = 0x8, scoped, tag = 'scoped memory for tpu_custom_call.1']
    #allocation4 [shape = 's32[2]{0}', space=sflag, size = 0x8, scoped, tag = 'scoped memory for tpu_custom_call.1']
    #allocation5 [shape = 'u8[8192]{0}', space=vmem, size = 0x2000, scoped, tag = 'input window, operand 1']
    #allocation6 [shape = 's32[2]{0}', space=sflag, size = 0x8, scoped, tag = 'scoped memory for tpu_custom_call.1']
    #allocation7 [shape = 'u8[16384]{0}', space=vmem, size = 0x4000, scoped, tag = 'input window, operand 2']
    #allocation8 [shape = 'u8[8192]{0}', space=vmem, size = 0x2000, scoped, tag = 'output window, operand 0']
    %14 = vsyncpa [#allocation3], 0
    %s15 = scalar_lea.sflag [#allocation3], 1
    %16 = vsyncpa %s15, 0
    %17 = vsyncpa [#allocation6], 0
    %s18 = scalar_lea.sflag [#allocation6], 1
    %19 = vsyncpa %s18, 0
    %20 = vsyncpa [#allocation4], 0
    %s21 = scalar_lea.sflag [#allocation4], 1
    %22 = vsyncpa %s21, 0
    loop: start=0, step=1, limit=4
    $region2: #{tpu_custom_call.1} parent=1 // loop_pre_header
      _
    $region3: #{tpu_custom_call.1} parent=1 // loop_header
      %s24 = sphi 0, %s28
      %p25 = scmp.ge.s32.totalorder %s24, 4
      %s31 = sphi 0, %s43
      %s32 = sphi 0, %s39
      %s33 = sphi 0, %s31
      %s34 = sphi 0, %s32
      %s35 = sphi 0, %s33
      %s36 = sphi 0, %s34
      %s48 = sphi 0, %s50
      %s51 = sphi 0, %s48
      %s52 = sphi 0, %s51
      %s68 = sphi 0, %s52
      %s76 = sphi 0, %s78
      %s79 = sphi 0, %s76
      %s80 = sphi 0, %s79
      %s96 = sphi 0, %s80
      %s104 = sphi 0, %s106
      %s107 = sphi 0, %s104
      %s108 = sphi 0, %s107
      %s124 = sphi 0, %s108
      %s128 = sphi 0, %s128
      %s130 = sphi 0, %s128
      %s131 = sphi 0, %s130
      %s145 = sphi 0, %s131
      %s149 = sphi 0, %s149
      %s151 = sphi 0, %s149
      %s152 = sphi 0, %s151
      %s166 = sphi 0, %s152
      %s170 = sphi 0, %s170
      %s172 = sphi 0, %s170
      %s173 = sphi 0, %s172
      %s187 = sphi 0, %s173
      %s191 = sphi 0, %s191
      %s193 = sphi 0, %s191
      %s194 = sphi 0, %s193
      %s208 = sphi 0, %s194
      %s212 = sphi 0, %s212
      %s214 = sphi 0, %s212
      %s215 = sphi 0, %s214
      %s229 = sphi 0, %s215
      %s233 = sphi 0, %s233
      %s235 = sphi 0, %s233
      %s236 = sphi 0, %s235
      %s250 = sphi 0, %s236
      %s258 = sphi 0, %s260
      %s261 = sphi 0, %s258
      %s262 = sphi 0, %s261
      %s278 = sphi 0, %s262
    $region4: #{tpu_custom_call.1} parent=1 // loop_header_branch
      %27 = sbr.rel (%p25) target = $region8
    $region5: #{tpu_custom_call.1} parent=1 // loop_body
      %s29 = ssub.s32 %s24, 1
      %s30 = ssub.s32 %s24, 2
      %s37 = sadd.s32 1, %s32
      %p38 = scmp.ge.s32.totalorder %s37, 2
      %s39 = scalar_select %p38, 0, %s37
      %s40 = sadd.s32 1, %s31
      %s41 = scalar_select %p38, %s40, %s31
      %p42 = scmp.ge.s32.totalorder %s41, 1
      %s43 = scalar_select %p42, 0, %s41
      %s44 = ssub.s32 %s32, %s39
      %s45 = ssub.s32 %s31, %s43
      %s46 = sor.u32 %s44, %s45
      %p47 = scmp.eq.s32.totalorder %s46, 0
      %s49 = sadd.s32 %s48, 1
      %s50 = scalar_select %p47, %s48, %s49
      %p53 = pneg %p47
      %p54 = scmp.eq.s32.totalorder %s24, 1
      %p55 = por %p53, %p54
      %p56 = scmp.ne.s32.totalorder %s48, %s51
      %p57 = scmp.eq.s32.totalorder %s24, 0
      %p58 = por %p56, %p57
      %p59 = scmp.ne.s32.totalorder %s48, %s51
      %p60 = scmp.eq.s32.totalorder %s29, 1
      %p61 = por %p59, %p60
      %p62 = scmp.ne.s32.totalorder %s51, %s52
      %p63 = scmp.eq.s32.totalorder %s29, 0
      %p64 = por %p62, %p63
      %p65 = scmp.ne.s32.totalorder %s51, %s52
      %p66 = scmp.eq.s32.totalorder %s30, 1
      %p67 = por %p65, %p66
      %p69 = scmp.ne.s32.totalorder %s52, %s68
      %p70 = scmp.eq.s32.totalorder %s30, 0
      %p71 = por %p69, %p70
      %s72 = ssub.s32 %s32, %s39
      %s73 = ssub.s32 %s31, %s43
      %s74 = sor.u32 %s72, %s73
      %p75 = scmp.eq.s32.totalorder %s74, 0
      %s77 = sadd.s32 %s76, 1
      %s78 = scalar_select %p75, %s76, %s77
      %p81 = pneg %p75
      %p82 = scmp.eq.s32.totalorder %s24, 1
      %p83 = por %p81, %p82
      %p84 = scmp.ne.s32.totalorder %s76, %s79
      %p85 = scmp.eq.s32.totalorder %s24, 0
      %p86 = por %p84, %p85
      %p87 = scmp.ne.s32.totalorder %s76, %s79
      %p88 = scmp.eq.s32.totalorder %s29, 1
      %p89 = por %p87, %p88
      %p90 = scmp.ne.s32.totalorder %s79, %s80
      %p91 = scmp.eq.s32.totalorder %s29, 0
      %p92 = por %p90, %p91
      %p93 = scmp.ne.s32.totalorder %s79, %s80
      %p94 = scmp.eq.s32.totalorder %s30, 1
      %p95 = por %p93, %p94
      %p97 = scmp.ne.s32.totalorder %s80, %s96
      %p98 = scmp.eq.s32.totalorder %s30, 0
      %p99 = por %p97, %p98
      %s100 = ssub.s32 %s32, %s39
      %s101 = ssub.s32 %s31, %s43
      %s102 = sor.u32 %s100, %s101
      %p103 = scmp.eq.s32.totalorder %s102, 0
      %s105 = sadd.s32 %s104, 1
      %s106 = scalar_select %p103, %s104, %s105
      %p109 = pneg %p103
      %p110 = scmp.eq.s32.totalorder %s24, 1
      %p111 = por %p109, %p110
      %p112 = scmp.ne.s32.totalorder %s104, %s107
      %p113 = scmp.eq.s32.totalorder %s24, 0
      %p114 = por %p112, %p113
      %p115 = scmp.ne.s32.totalorder %s104, %s107
      %p116 = scmp.eq.s32.totalorder %s29, 1
      %p117 = por %p115, %p116
      %p118 = scmp.ne.s32.totalorder %s107, %s108
      %p119 = scmp.eq.s32.totalorder %s29, 0
      %p120 = por %p118, %p119
      %p121 = scmp.ne.s32.totalorder %s107, %s108
      %p122 = scmp.eq.s32.totalorder %s30, 1
      %p123 = por %p121, %p122
      %p125 = scmp.ne.s32.totalorder %s108, %s124
      %p126 = scmp.eq.s32.totalorder %s30, 0
      %p127 = por %p125, %p126
      %s129 = sadd.s32 %s128, 1
      %p132 = scmp.eq.s32.totalorder %s24, 1
      %p133 = scmp.ne.s32.totalorder %s128, %s130
      %p134 = scmp.eq.s32.totalorder %s24, 0
      %p135 = por %p133, %p134
      %p136 = scmp.ne.s32.totalorder %s128, %s130
      %p137 = scmp.eq.s32.totalorder %s29, 1
      %p138 = por %p136, %p137
      %p139 = scmp.ne.s32.totalorder %s130, %s131
      %p140 = scmp.eq.s32.totalorder %s29, 0
      %p141 = por %p139, %p140
      %p142 = scmp.ne.s32.totalorder %s130, %s131
      %p143 = scmp.eq.s32.totalorder %s30, 1
      %p144 = por %p142, %p143
      %p146 = scmp.ne.s32.totalorder %s131, %s145
      %p147 = scmp.eq.s32.totalorder %s30, 0
      %p148 = por %p146, %p147
      %s150 = sadd.s32 %s149, 1
      %p153 = scmp.eq.s32.totalorder %s24, 1
      %p154 = scmp.ne.s32.totalorder %s149, %s151
      %p155 = scmp.eq.s32.totalorder %s24, 0
      %p156 = por %p154, %p155
      %p157 = scmp.ne.s32.totalorder %s149, %s151
      %p158 = scmp.eq.s32.totalorder %s29, 1
      %p159 = por %p157, %p158
      %p160 = scmp.ne.s32.totalorder %s151, %s152
      %p161 = scmp.eq.s32.totalorder %s29, 0
      %p162 = por %p160, %p161
      %p163 = scmp.ne.s32.totalorder %s151, %s152
      %p164 = scmp.eq.s32.totalorder %s30, 1
      %p165 = por %p163, %p164
      %p167 = scmp.ne.s32.totalorder %s152, %s166
      %p168 = scmp.eq.s32.totalorder %s30, 0
      %p169 = por %p167, %p168
      %s171 = sadd.s32 %s170, 1
      %p174 = scmp.eq.s32.totalorder %s24, 1
      %p175 = scmp.ne.s32.totalorder %s170, %s172
      %p176 = scmp.eq.s32.totalorder %s24, 0
      %p177 = por %p175, %p176
      %p178 = scmp.ne.s32.totalorder %s170, %s172
      %p179 = scmp.eq.s32.totalorder %s29, 1
      %p180 = por %p178, %p179
      %p181 = scmp.ne.s32.totalorder %s172, %s173
      %p182 = scmp.eq.s32.totalorder %s29, 0
      %p183 = por %p181, %p182
      %p184 = scmp.ne.s32.totalorder %s172, %s173
      %p185 = scmp.eq.s32.totalorder %s30, 1
      %p186 = por %p184, %p185
      %p188 = scmp.ne.s32.totalorder %s173, %s187
      %p189 = scmp.eq.s32.totalorder %s30, 0
      %p190 = por %p188, %p189
      %s192 = sadd.s32 %s191, 1
      %p195 = scmp.eq.s32.totalorder %s24, 1
      %p196 = scmp.ne.s32.totalorder %s191, %s193
      %p197 = scmp.eq.s32.totalorder %s24, 0
      %p198 = por %p196, %p197
      %p199 = scmp.ne.s32.totalorder %s191, %s193
      %p200 = scmp.eq.s32.totalorder %s29, 1
      %p201 = por %p199, %p200
      %p202 = scmp.ne.s32.totalorder %s193, %s194
      %p203 = scmp.eq.s32.totalorder %s29, 0
      %p204 = por %p202, %p203
      %p205 = scmp.ne.s32.totalorder %s193, %s194
      %p206 = scmp.eq.s32.totalorder %s30, 1
      %p207 = por %p205, %p206
      %p209 = scmp.ne.s32.totalorder %s194, %s208
      %p210 = scmp.eq.s32.totalorder %s30, 0
      %p211 = por %p209, %p210
      %s213 = sadd.s32 %s212, 1
      %p216 = scmp.eq.s32.totalorder %s24, 1
      %p217 = scmp.ne.s32.totalorder %s212, %s214
      %p218 = scmp.eq.s32.totalorder %s24, 0
      %p219 = por %p217, %p218
      %p220 = scmp.ne.s32.totalorder %s212, %s214
      %p221 = scmp.eq.s32.totalorder %s29, 1
      %p222 = por %p220, %p221
      %p223 = scmp.ne.s32.totalorder %s214, %s215
      %p224 = scmp.eq.s32.totalorder %s29, 0
      %p225 = por %p223, %p224
      %p226 = scmp.ne.s32.totalorder %s214, %s215
      %p227 = scmp.eq.s32.totalorder %s30, 1
      %p228 = por %p226, %p227
      %p230 = scmp.ne.s32.totalorder %s215, %s229
      %p231 = scmp.eq.s32.totalorder %s30, 0
      %p232 = por %p230, %p231
      %s234 = sadd.s32 %s233, 1
      %p237 = scmp.eq.s32.totalorder %s24, 1
      %p238 = scmp.ne.s32.totalorder %s233, %s235
      %p239 = scmp.eq.s32.totalorder %s24, 0
      %p240 = por %p238, %p239
      %p241 = scmp.ne.s32.totalorder %s233, %s235
      %p242 = scmp.eq.s32.totalorder %s29, 1
      %p243 = por %p241, %p242
      %p244 = scmp.ne.s32.totalorder %s235, %s236
      %p245 = scmp.eq.s32.totalorder %s29, 0
      %p246 = por %p244, %p245
      %p247 = scmp.ne.s32.totalorder %s235, %s236
      %p248 = scmp.eq.s32.totalorder %s30, 1
      %p249 = por %p247, %p248
      %p251 = scmp.ne.s32.totalorder %s236, %s250
      %p252 = scmp.eq.s32.totalorder %s30, 0
      %p253 = por %p251, %p252
      %s254 = ssub.s32 %s32, %s39
      %s255 = ssub.s32 %s31, %s43
      %s256 = sor.u32 %s254, %s255
      %p257 = scmp.eq.s32.totalorder %s256, 0
      %s259 = sadd.s32 %s258, 1
      %s260 = scalar_select %p257, %s258, %s259
      %p263 = pneg %p257
      %p264 = scmp.eq.s32.totalorder %s24, 1
      %p265 = por %p263, %p264
      %p266 = scmp.ne.s32.totalorder %s258, %s261
      %p267 = scmp.eq.s32.totalorder %s24, 0
      %p268 = por %p266, %p267
      %p269 = scmp.ne.s32.totalorder %s258, %s261
      %p270 = scmp.eq.s32.totalorder %s29, 1
      %p271 = por %p269, %p270
      %p272 = scmp.ne.s32.totalorder %s261, %s262
      %p273 = scmp.eq.s32.totalorder %s29, 0
      %p274 = por %p272, %p273
      %p275 = scmp.ne.s32.totalorder %s261, %s262
      %p276 = scmp.eq.s32.totalorder %s30, 1
      %p277 = por %p275, %p276
      %p279 = scmp.ne.s32.totalorder %s262, %s278
      %p280 = scmp.eq.s32.totalorder %s30, 0
      %p281 = por %p279, %p280
      %p282 = scmp.le.s32.totalorder 1, %s24
      %p283 = scmp.lt.s32.totalorder %s24, 3
      %p284 = pnand %p282, %p283
      %p285 = pneg %p284
      // Predicated region
      $region9: #{tpu_custom_call.1} parent=5 // pred_check
        _
      $region10: #{tpu_custom_call.1} parent=5 // pred_check_branch
        %287 = sbr.rel (%p284) target = $region12
      $region11: #{tpu_custom_call.1} parent=5 // pred_region
        %s288 = ssub.s32 %s24, 1
        // Predicated region
        $region13: #{tpu_custom_call.1} parent=11 // pred_check
          %p289 = pneg %p141
        $region14: #{tpu_custom_call.1} parent=11 // pred_check_branch
          %291 = sbr.rel (%p289) target = $region16
        $region15: #{tpu_custom_call.1} parent=11 // pred_region
          _
        $region16: #{tpu_custom_call.1} parent=11 // pred_fallthru
          _
        // Predicated region
        $region17: #{tpu_custom_call.1} parent=11 // pred_check
          %p292 = pneg %p162
        $region18: #{tpu_custom_call.1} parent=11 // pred_check_branch
          %294 = sbr.rel (%p292) target = $region20
        $region19: #{tpu_custom_call.1} parent=11 // pred_region
          _
        $region20: #{tpu_custom_call.1} parent=11 // pred_fallthru
          _
        // Predicated region
        $region21: #{tpu_custom_call.1} parent=11 // pred_check
          %p295 = pneg %p183
        $region22: #{tpu_custom_call.1} parent=11 // pred_check_branch
          %297 = sbr.rel (%p295) target = $region24
        $region23: #{tpu_custom_call.1} parent=11 // pred_region
          _
        $region24: #{tpu_custom_call.1} parent=11 // pred_fallthru
          _
        // Predicated region
        $region25: #{tpu_custom_call.1} parent=11 // pred_check
          %p298 = pneg %p204
        $region26: #{tpu_custom_call.1} parent=11 // pred_check_branch
          %300 = sbr.rel (%p298) target = $region28
        $region27: #{tpu_custom_call.1} parent=11 // pred_region
          _
        $region28: #{tpu_custom_call.1} parent=11 // pred_fallthru
          _
        // Predicated region
        $region29: #{tpu_custom_call.1} parent=11 // pred_check
          %p301 = pneg %p225
        $region30: #{tpu_custom_call.1} parent=11 // pred_check_branch
          %303 = sbr.rel (%p301) target = $region32
        $region31: #{tpu_custom_call.1} parent=11 // pred_region
          _
        $region32: #{tpu_custom_call.1} parent=11 // pred_fallthru
          _
        // Predicated region
        $region33: #{tpu_custom_call.1} parent=11 // pred_check
          %p304 = pneg %p246
        $region34: #{tpu_custom_call.1} parent=11 // pred_check_branch
          %306 = sbr.rel (%p304) target = $region36
        $region35: #{tpu_custom_call.1} parent=11 // pred_region
          _
        $region36: #{tpu_custom_call.1} parent=11 // pred_fallthru
          _
      $region12: #{tpu_custom_call.1} parent=5 // pred_fallthru
        _
      %p307 = scmp.lt.s32.totalorder %s24, 2
      // Predicated region
      $region37: #{tpu_custom_call.1} parent=5 // pred_check
        %p308 = pneg %p307
      $region38: #{tpu_custom_call.1} parent=5 // pred_check_branch
        %310 = sbr.rel (%p308) target = $region40
      $region39: #{tpu_custom_call.1} parent=5 // pred_region
        // Predicated region
        $region41: #{tpu_custom_call.1} parent=39 // pred_check
          %p311 = pneg %p58
        $region42: #{tpu_custom_call.1} parent=39 // pred_check_branch
          %313 = sbr.rel (%p311) target = $region44
        $region43: #{tpu_custom_call.1} parent=39 // pred_region
          %s314 = sand.u32 %s48, 1
          %s315 = scalar_lea.sflag [#allocation3], %s314
          %s316 = sand.u32 %s48, 1
          %s317 = smul.addr %s316, 8
          %s318 = scalar_lea.vmem [#allocation2], %s317
          %s319 = smul.u32 2, %s31
          %s321 = ssub.s32 128, 128
          %322 = vsyncadd %s315, %s321
          %s323 = smul.addr %s32, 2
          %s324 = sadd.s32 %s319, %s323
          %s325 = smul.addr %s324, 64
          %s326 = scalar_lea.hbm %s0, %s325
          %s328 = sshll.u32 %s318, 4
          %s329 = int_to_ptr.vmem [resolvable:$true] %s328
          %331 = dma.hbm_to_vmem [thread:$0]  %s326, 128, %s329, %s315
        $region44: #{tpu_custom_call.1} parent=39 // pred_fallthru
          _
        // Predicated region
        $region45: #{tpu_custom_call.1} parent=39 // pred_check
          %p332 = pneg %p86
        $region46: #{tpu_custom_call.1} parent=39 // pred_check_branch
          %334 = sbr.rel (%p332) target = $region48
        $region47: #{tpu_custom_call.1} parent=39 // pred_region
          %s335 = sand.u32 %s24, 1
          %s336 = scalar_lea.sflag [#allocation6], %s335
          %s337 = sand.u32 %s76, 1
          %s338 = smul.addr %s337, 8
          %s339 = scalar_lea.vmem [#allocation5], %s338
          %s340 = smul.u32 2, %s31
          %s342 = ssub.s32 128, 128
          %343 = vsyncadd %s336, %s342
          %s344 = smul.addr %s32, 2
          %s345 = sadd.s32 %s340, %s344
          %s346 = smul.addr %s345, 64
          %s347 = scalar_lea.hbm %s1, %s346
          %s349 = sshll.u32 %s339, 4
          %s350 = int_to_ptr.vmem [resolvable:$true] %s349
          %352 = dma.hbm_to_vmem [thread:$0]  %s347, 128, %s350, %s336
        $region48: #{tpu_custom_call.1} parent=39 // pred_fallthru
          _
        // Predicated region
        $region49: #{tpu_custom_call.1} parent=39 // pred_check
          %p353 = pneg %p114
        $region50: #{tpu_custom_call.1} parent=39 // pred_check_branch
          %355 = sbr.rel (%p353) target = $region52
        $region51: #{tpu_custom_call.1} parent=39 // pred_region
          %s356 = sand.u32 %s24, 1
          %s357 = scalar_lea.sflag [#allocation6], %s356
          %s358 = sand.u32 %s104, 1
          %s359 = smul.addr %s358, 16
          %s360 = scalar_lea.vmem [#allocation7], %s359
          %s361 = smul.u32 2, %s31
          %s363 = ssub.s32 256, 256
          %364 = vsyncadd %s357, %s363
          %s365 = smul.addr %s32, 2
          %s366 = sadd.s32 %s361, %s365
          %s367 = smul.addr %s366, 128
          %s368 = scalar_lea.hbm %s2, %s367
          %s370 = sshll.u32 %s360, 4
          %s371 = int_to_ptr.vmem [resolvable:$true] %s370
          %373 = dma.hbm_to_vmem [thread:$0]  %s368, 256, %s371, %s357
        $region52: #{tpu_custom_call.1} parent=39 // pred_fallthru
          _
      $region40: #{tpu_custom_call.1} parent=5 // pred_fallthru
        _
      %p374 = scmp.le.s32.totalorder 1, %s24
      %p375 = scmp.lt.s32.totalorder %s24, 3
      %p376 = pnand %p374, %p375
      %p377 = pneg %p376
      // Predicated region
      $region53: #{tpu_custom_call.1} parent=5 // pred_check
        _
      $region54: #{tpu_custom_call.1} parent=5 // pred_check_branch
        %379 = sbr.rel (%p376) target = $region56
      $region55: #{tpu_custom_call.1} parent=5 // pred_region
        %s380 = ssub.s32 %s24, 1
        %s381 = sand.u32 %s51, 1
        %s382 = scalar_lea.sflag [#allocation3], %s381
        %s383 = sand.u32 %s51, 1
        %s384 = smul.addr %s383, 8
        %s385 = scalar_lea.vmem [#allocation2], %s384
        // Predicated region
        $region57: #{tpu_custom_call.1} parent=55 // pred_check
          %p386 = pneg %p64
        $region58: #{tpu_custom_call.1} parent=55 // pred_check_branch
          %388 = sbr.rel (%p386) target = $region60
        $region59: #{tpu_custom_call.1} parent=55 // pred_region
          %389 = dma.done %s382, 128
        $region60: #{tpu_custom_call.1} parent=55 // pred_fallthru
          _
        %s390 = sand.u32 %s29, 1
        %s391 = scalar_lea.sflag [#allocation6], %s390
        %s392 = sand.u32 %s79, 1
        %s393 = smul.addr %s392, 8
        %s394 = scalar_lea.vmem [#allocation5], %s393
        // Predicated region
        $region61: #{tpu_custom_call.1} parent=55 // pred_check
          %p395 = pneg %p92
        $region62: #{tpu_custom_call.1} parent=55 // pred_check_branch
          %397 = sbr.rel (%p395) target = $region64
        $region63: #{tpu_custom_call.1} parent=55 // pred_region
          %398 = dma.done %s391, 128
        $region64: #{tpu_custom_call.1} parent=55 // pred_fallthru
          _
        %s399 = sand.u32 %s29, 1
        %s400 = scalar_lea.sflag [#allocation6], %s399
        %s401 = sand.u32 %s107, 1
        %s402 = smul.addr %s401, 16
        %s403 = scalar_lea.vmem [#allocation7], %s402
        // Predicated region
        $region65: #{tpu_custom_call.1} parent=55 // pred_check
          %p404 = pneg %p120
        $region66: #{tpu_custom_call.1} parent=55 // pred_check_branch
          %406 = sbr.rel (%p404) target = $region68
        $region67: #{tpu_custom_call.1} parent=55 // pred_region
          %407 = dma.done %s400, 256
        $region68: #{tpu_custom_call.1} parent=55 // pred_fallthru
          _
        %s408 = sand.u32 %s51, 1
        %s409 = scalar_lea.sflag [#allocation3], %s408
        %s410 = sand.u32 %s51, 1
        %s411 = smul.addr %s410, 8
        %s412 = scalar_lea.vmem [#allocation2], %s411
        %p413 = pneg %p64
        %p414 = pneg %p61
        %s415 = sand.u32 %s29, 1
        %s416 = scalar_lea.sflag [#allocation6], %s415
        %s417 = sand.u32 %s79, 1
        %s418 = smul.addr %s417, 8
        %s419 = scalar_lea.vmem [#allocation5], %s418
        %p420 = pneg %p92
        %p421 = pneg %p89
        %s422 = sand.u32 %s29, 1
        %s423 = scalar_lea.sflag [#allocation6], %s422
        %s424 = sand.u32 %s107, 1
        %s425 = smul.addr %s424, 16
        %s426 = scalar_lea.vmem [#allocation7], %s425
        %p427 = pneg %p120
        %p428 = pneg %p117
        %p429 = pneg %p141
        %p430 = pneg %p138
        %p431 = pneg %p162
        %p432 = pneg %p159
        %p433 = pneg %p183
        %p434 = pneg %p180
        %p435 = pneg %p204
        %p436 = pneg %p201
        %p437 = pneg %p225
        %p438 = pneg %p222
        %p439 = pneg %p246
        %p440 = pneg %p243
        %p441 = pneg %p274
        %p442 = pneg %p271
        %s443 = sand.u32 %s261, 1
        %s444 = scalar_lea.sflag [#allocation4], %s443
        %s445 = sand.u32 %s261, 1
        %s446 = smul.addr %s445, 8
        %s447 = scalar_lea.vmem [#allocation8], %s446
        %s448 = smul.u32 2, %s33
        %s449 = smul.u32 2, %s33
        %s450 = smul.u32 2, %s33
        %s451 = smul.u32 2, %s33
        %v453 = vld [vmem:[%s403] sm:$0xff]
        %v454 = vld [vmem:[%s403 + $0x8] sm:$0xff]
        %v455 = vld [vmem:[%s394] sm:$0xff]
        %v457 = vcombine.high %v455, %v455
        %v459 = vpack.c.bf16 %v455, %v455
        %v460 = vpack.c.bf16 %v457, %v457
        %v461 = vld [vmem:[%s3] sm:$0xf]
        %v462 = vld [vmem:[%s4] sm:$0xf]
        %464 = vset.pattern.permute.xlu0 0
        %465 = vperm.xlu0 %464, %v462
        %v466 = vpop.permute.xlu0 %465
        %vm468 = vcmask 64512
        %v470 = vsel %vm468, %v461, 0
        %472 = vmatprep.subr.mxu0 0.0
        %473 = vmatpush1.msra.mxu0 0.0
        %474 = vmatprep.subr.mxu0 0.0
        %475 = vmatpush1.msra.mxu0 0.0
        %476 = vmatprep.subr.mxu0 0.0
        %477 = vmatpush1.msra.mxu0 0.0
        %478 = vmatprep.subr.mxu0 0.0
        %479 = vmatpush1.msra.mxu0 0.0
        %480 = vmatprep.subr.mxu0 0.0
        %481 = vmatpush1.msra.mxu0 0.0
        %482 = vmatprep.subr.mxu0 0.0
        %483 = vmatpush1.msra.mxu0 0.0
        %484 = vmatprep.subr.mxu0 0.0
        %485 = vmatpush1.msra.mxu0 0.0
        %486 = vmatprep.subr.mxu0 0.0
        %487 = vmatpush1.msra.mxu0 0.0
        %488 = vmatprep.subr.mxu0 0.0
        %489 = vmatpush1.msra.mxu0 0.0
        %490 = vmatprep.subr.mxu0 0.0
        %491 = vmatpush1.msra.mxu0 0.0
        %492 = vmatprep.subr.mxu0 0.0
        %493 = vmatpush1.msra.mxu0 0.0
        %494 = vmatprep.subr.mxu0 0.0
        %495 = vmatpush1.msra.mxu0 0.0
        %496 = vmatprep.subr.mxu0 0.0
        %497 = vmatpush1.msra.mxu0 0.0
        %498 = vmatprep.subr.mxu0 0.0
        %499 = vmatpush1.msra.mxu0 0.0
        %500 = vmatprep.subr.mxu0 0.0
        %501 = vmatpush1.msra.mxu0 0.0
        %502 = vmatprep.subr.mxu0 %v454
        %503 = vmatpush1.msra.mxu0 %v453
        %504 = vmatprep.subr.mxu0 0.0
        %505 = vmatpush2.msra.mxu0 0.0
        %506 = vmatprep.subr.mxu0 0.0
        %507 = vmatpush2.msra.mxu0 0.0
        %508 = vmatprep.subr.mxu0 0.0
        %509 = vmatpush2.msra.mxu0 0.0
        %510 = vmatprep.subr.mxu0 0.0
        %511 = vmatpush2.msra.mxu0 0.0
        %512 = vmatprep.subr.mxu0 0.0
        %513 = vmatpush2.msra.mxu0 0.0
        %514 = vmatprep.subr.mxu0 0.0
        %515 = vmatpush2.msra.mxu0 0.0
        %516 = vmatprep.subr.mxu0 0.0
        %517 = vmatpush2.msra.mxu0 0.0
        %518 = vmatprep.subr.mxu0 0.0
        %519 = vmatpush2.msra.mxu0 0.0
        %520 = vmatprep.subr.mxu0 0.0
        %521 = vmatpush2.msra.mxu0 0.0
        %522 = vmatprep.subr.mxu0 0.0
        %523 = vmatpush2.msra.mxu0 0.0
        %524 = vmatprep.subr.mxu0 0.0
        %525 = vmatpush2.msra.mxu0 0.0
        %526 = vmatprep.subr.mxu0 0.0
        %527 = vmatpush2.msra.mxu0 0.0
        %528 = vmatprep.subr.mxu0 0.0
        %529 = vmatpush2.msra.mxu0 0.0
        %530 = vmatprep.subr.mxu0 0.0
        %531 = vmatpush2.msra.mxu0 0.0
        %532 = vmatprep.subr.mxu0 0.0
        %533 = vmatpush2.msra.mxu0 0.0
        %534 = vmatprep.subr.mxu0 0.0
        %535 = vmatpush2.msra.mxu0 0.0
        %536 = vmatprep.mubr.f32.mxu0 0.0
        %537 = vmatmul.mubr.f32.gmra.mxu0 %v470
        %v538 = vpop.f32.mrf.mxu0
        %v539 = vadd.f32 %v466, %v538
        %v540 = vpop.f32.mrf.mxu0
        %v541 = vadd.f32 %v466, %v540
        %542 = vdwg.mxu0
        %v543 = vld [vmem:[%s7] sm:$0x3]
        %vm544 = vcmask 31744
        %v546 = vsel %vm544, %v543, 0
        %vm548 = vcmask 1041408
        %v550 = vsel %vm548, %v459, 0
        %v553 = vsel %vm548, %v460, 0
        %555 = vmatprep.subr.bf16.mxu0 0
        %556 = vmatpush1.bf16.msra.mxu0 0
        %557 = vmatprep.subr.bf16.mxu0 0
        %558 = vmatpush1.bf16.msra.mxu0 0
        %559 = vmatprep.subr.bf16.mxu0 0
        %560 = vmatpush1.bf16.msra.mxu0 0
        %561 = vmatprep.subr.bf16.mxu0 0
        %562 = vmatpush1.bf16.msra.mxu0 0
        %563 = vmatprep.subr.bf16.mxu0 0
        %564 = vmatpush1.bf16.msra.mxu0 0
        %565 = vmatprep.subr.bf16.mxu0 0
        %566 = vmatpush1.bf16.msra.mxu0 0
        %567 = vmatprep.subr.bf16.mxu0 0
        %568 = vmatpush1.bf16.msra.mxu0 0
        %569 = vmatprep.subr.bf16.mxu0 %v553
        %570 = vmatpush1.bf16.msra.mxu0 %v550
        %571 = vmatprep.subr.bf16.mxu0 0
        %572 = vmatpush2.bf16.msra.mxu0 0
        %573 = vmatprep.subr.bf16.mxu0 0
        %574 = vmatpush2.bf16.msra.mxu0 0
        %575 = vmatprep.subr.bf16.mxu0 0
        %576 = vmatpush2.bf16.msra.mxu0 0
        %577 = vmatprep.subr.bf16.mxu0 0
        %578 = vmatpush2.bf16.msra.mxu0 0
        %579 = vmatprep.subr.bf16.mxu0 0
        %580 = vmatpush2.bf16.msra.mxu0 0
        %581 = vmatprep.subr.bf16.mxu0 0
        %582 = vmatpush2.bf16.msra.mxu0 0
        %583 = vmatprep.subr.bf16.mxu0 0
        %584 = vmatpush2.bf16.msra.mxu0 0
        %585 = vmatprep.subr.bf16.mxu0 0
        %586 = vmatpush2.bf16.msra.mxu0 0
        %587 = vmatprep.mubr.bf16.mxu0 0
        %588 = vmatmul.mubr.bf16.gmra.mxu0 %v546
        %v589 = vpop.f32.mrf.mxu0
        %v590 = vadd.f32 0.0, %v589
        %v591 = vpop.f32.mrf.mxu0
        %v592 = vadd.f32 0.0, %v591
        %v593 = vpop.f32.mrf.mxu0
        %v594 = vpop.f32.mrf.mxu0
        %595 = vdwg.mxu0
        %v596 = vadd.f32 %v539, %v590
        %v597 = vadd.f32 %v541, %v592
        %v598 = vmax.f32 %v596, 0.0
        %v599 = vmax.f32 %v597, 0.0
        %v600 = vld [vmem:[%s5] sm:$0xf]
        %v601 = vld [vmem:[%s6] sm:$0xf]
        %603 = vset.pattern.permute.xlu0 0
        %604 = vperm.xlu0 %603, %v601
        %v605 = vpop.permute.xlu0 %604
        %v608 = vsel %vm468, %v600, 0
        %610 = vmatprep.subr.mxu0 0.0
        %611 = vmatpush1.msra.mxu0 0.0
        %612 = vmatprep.subr.mxu0 0.0
        %613 = vmatpush1.msra.mxu0 0.0
        %614 = vmatprep.subr.mxu0 0.0
        %615 = vmatpush1.msra.mxu0 0.0
        %616 = vmatprep.subr.mxu0 0.0
        %617 = vmatpush1.msra.mxu0 0.0
        %618 = vmatprep.subr.mxu0 0.0
        %619 = vmatpush1.msra.mxu0 0.0
        %620 = vmatprep.subr.mxu0 0.0
        %621 = vmatpush1.msra.mxu0 0.0
        %622 = vmatprep.subr.mxu0 0.0
        %623 = vmatpush1.msra.mxu0 0.0
        %624 = vmatprep.subr.mxu0 0.0
        %625 = vmatpush1.msra.mxu0 0.0
        %626 = vmatprep.subr.mxu0 0.0
        %627 = vmatpush1.msra.mxu0 0.0
        %628 = vmatprep.subr.mxu0 0.0
        %629 = vmatpush1.msra.mxu0 0.0
        %630 = vmatprep.subr.mxu0 0.0
        %631 = vmatpush1.msra.mxu0 0.0
        %632 = vmatprep.subr.mxu0 0.0
        %633 = vmatpush1.msra.mxu0 0.0
        %634 = vmatprep.subr.mxu0 0.0
        %635 = vmatpush1.msra.mxu0 0.0
        %636 = vmatprep.subr.mxu0 0.0
        %637 = vmatpush1.msra.mxu0 0.0
        %638 = vmatprep.subr.mxu0 0.0
        %639 = vmatpush1.msra.mxu0 0.0
        %640 = vmatprep.subr.mxu0 %v454
        %641 = vmatpush1.msra.mxu0 %v453
        %642 = vmatprep.subr.mxu0 0.0
        %643 = vmatpush2.msra.mxu0 0.0
        %644 = vmatprep.subr.mxu0 0.0
        %645 = vmatpush2.msra.mxu0 0.0
        %646 = vmatprep.subr.mxu0 0.0
        %647 = vmatpush2.msra.mxu0 0.0
        %648 = vmatprep.subr.mxu0 0.0
        %649 = vmatpush2.msra.mxu0 0.0
        %650 = vmatprep.subr.mxu0 0.0
        %651 = vmatpush2.msra.mxu0 0.0
        %652 = vmatprep.subr.mxu0 0.0
        %653 = vmatpush2.msra.mxu0 0.0
        %654 = vmatprep.subr.mxu0 0.0
        %655 = vmatpush2.msra.mxu0 0.0
        %656 = vmatprep.subr.mxu0 0.0
        %657 = vmatpush2.msra.mxu0 0.0
        %658 = vmatprep.subr.mxu0 0.0
        %659 = vmatpush2.msra.mxu0 0.0
        %660 = vmatprep.subr.mxu0 0.0
        %661 = vmatpush2.msra.mxu0 0.0
        %662 = vmatprep.subr.mxu0 0.0
        %663 = vmatpush2.msra.mxu0 0.0
        %664 = vmatprep.subr.mxu0 0.0
        %665 = vmatpush2.msra.mxu0 0.0
        %666 = vmatprep.subr.mxu0 0.0
        %667 = vmatpush2.msra.mxu0 0.0
        %668 = vmatprep.subr.mxu0 0.0
        %669 = vmatpush2.msra.mxu0 0.0
        %670 = vmatprep.subr.mxu0 0.0
        %671 = vmatpush2.msra.mxu0 0.0
        %672 = vmatprep.subr.mxu0 0.0
        %673 = vmatpush2.msra.mxu0 0.0
        %674 = vmatprep.mubr.f32.mxu0 0.0
        %675 = vmatmul.mubr.f32.gmra.mxu0 %v608
        %v676 = vpop.f32.mrf.mxu0
        %v677 = vadd.f32 %v605, %v676
        %v678 = vpop.f32.mrf.mxu0
        %v679 = vadd.f32 %v605, %v678
        %680 = vdwg.mxu0
        %v681 = vld [vmem:[%s8] sm:$0x3]
        %v682 = vpack.c.bf16 %v598, %v598
        %v683 = vpack.c.bf16 %v599, %v599
        %v685 = vsel %vm544, %v681, 0
        %v688 = vsel %vm548, %v682, 0
        %v691 = vsel %vm548, %v683, 0
        %693 = vmatprep.subr.bf16.mxu0 0
        %694 = vmatpush1.bf16.msra.mxu0 0
        %695 = vmatprep.subr.bf16.mxu0 0
        %696 = vmatpush1.bf16.msra.mxu0 0
        %697 = vmatprep.subr.bf16.mxu0 0
        %698 = vmatpush1.bf16.msra.mxu0 0
        %699 = vmatprep.subr.bf16.mxu0 0
        %700 = vmatpush1.bf16.msra.mxu0 0
        %701 = vmatprep.subr.bf16.mxu0 0
        %702 = vmatpush1.bf16.msra.mxu0 0
        %703 = vmatprep.subr.bf16.mxu0 0
        %704 = vmatpush1.bf16.msra.mxu0 0
        %705 = vmatprep.subr.bf16.mxu0 0
        %706 = vmatpush1.bf16.msra.mxu0 0
        %707 = vmatprep.subr.bf16.mxu0 %v691
        %708 = vmatpush1.bf16.msra.mxu0 %v688
        %709 = vmatprep.subr.bf16.mxu0 0
        %710 = vmatpush2.bf16.msra.mxu0 0
        %711 = vmatprep.subr.bf16.mxu0 0
        %712 = vmatpush2.bf16.msra.mxu0 0
        %713 = vmatprep.subr.bf16.mxu0 0
        %714 = vmatpush2.bf16.msra.mxu0 0
        %715 = vmatprep.subr.bf16.mxu0 0
        %716 = vmatpush2.bf16.msra.mxu0 0
        %717 = vmatprep.subr.bf16.mxu0 0
        %718 = vmatpush2.bf16.msra.mxu0 0
        %719 = vmatprep.subr.bf16.mxu0 0
        %720 = vmatpush2.bf16.msra.mxu0 0
        %721 = vmatprep.subr.bf16.mxu0 0
        %722 = vmatpush2.bf16.msra.mxu0 0
        %723 = vmatprep.subr.bf16.mxu0 0
        %724 = vmatpush2.bf16.msra.mxu0 0
        %725 = vmatprep.mubr.bf16.mxu0 0
        %726 = vmatmul.mubr.bf16.gmra.mxu0 %v685
        %v727 = vpop.f32.mrf.mxu0
        %v728 = vadd.f32 0.0, %v727
        %v729 = vpop.f32.mrf.mxu0
        %v730 = vadd.f32 0.0, %v729
        %v731 = vpop.f32.mrf.mxu0
        %v732 = vpop.f32.mrf.mxu0
        %733 = vdwg.mxu0
        %v734 = vadd.f32 %v677, %v728
        %v735 = vadd.f32 %v679, %v730
        %v736 = vld [vmem:[%s385] sm:$0xff]
        %v737 = vxor.u32 %v734, 2147483648
        %v738 = vxor.u32 %v735, 2147483648
        %v739 = vmul.f32 %v737, 1.442695
        %v740 = vpow.pop %v739
        %v741 = vmul.f32 %v738, 1.442695
        %v742 = vpow.pop %v741
        %v743 = vadd.f32 %v740, 1.0
        %v744 = vadd.f32 %v742, 1.0
        %v745 = vrcp.pop %v743
        %v746 = vmul.f32 1.0, %v745
        %v747 = vrcp.pop %v744
        %v748 = vmul.f32 1.0, %v747
        %v751 = vcombine.low %v746, %v748
        %v753 = vmul.f32 %v736, %v751
        %754 = vst [vmem:[%s447] sm:$0xff] %v753
        %s755 = sand.u32 %s261, 1
        %s756 = scalar_lea.sflag [#allocation4], %s755
        %s757 = sand.u32 %s261, 1
        %s758 = smul.addr %s757, 8
        %s759 = scalar_lea.vmem [#allocation8], %s758
        // Predicated region
        $region69: #{tpu_custom_call.1} parent=55 // pred_check
          %p760 = pneg %p271
        $region70: #{tpu_custom_call.1} parent=55 // pred_check_branch
          %762 = sbr.rel (%p760) target = $region72
        $region71: #{tpu_custom_call.1} parent=55 // pred_region
          %s763 = smul.u32 2, %s33
          %s765 = ssub.s32 128, 128
          %766 = vsyncadd %s756, %s765
          %s767 = smul.addr %s34, 2
          %s768 = sadd.s32 %s763, %s767
          %s769 = smul.addr %s768, 64
          %s770 = scalar_lea.hbm %s9, %s769
          %s772 = sshll.u32 %s759, 4
          %s773 = int_to_ptr.vmem [resolvable:$true] %s772
          %775 = dma.vmem_to_hbm [thread:$0]  %s773, 128, %s770, %s756
        $region72: #{tpu_custom_call.1} parent=55 // pred_fallthru
          _
      $region56: #{tpu_custom_call.1} parent=5 // pred_fallthru
        _
      %p776 = scmp.le.s32.totalorder 2, %s24
      // Predicated region
      $region73: #{tpu_custom_call.1} parent=5 // pred_check
        %p777 = pneg %p776
      $region74: #{tpu_custom_call.1} parent=5 // pred_check_branch
        %779 = sbr.rel (%p777) target = $region76
      $region75: #{tpu_custom_call.1} parent=5 // pred_region
        %s780 = ssub.s32 %s24, 2
        // Predicated region
        $region77: #{tpu_custom_call.1} parent=75 // pred_check
          %p781 = pneg %p277
        $region78: #{tpu_custom_call.1} parent=75 // pred_check_branch
          %783 = sbr.rel (%p781) target = $region80
        $region79: #{tpu_custom_call.1} parent=75 // pred_region
          %s784 = sand.u32 %s262, 1
          %s785 = scalar_lea.sflag [#allocation4], %s784
          %s786 = sand.u32 %s262, 1
          %s787 = smul.addr %s786, 8
          %s788 = scalar_lea.vmem [#allocation8], %s787
          %789 = dma.done %s785, 128
        $region80: #{tpu_custom_call.1} parent=75 // pred_fallthru
          _
      $region76: #{tpu_custom_call.1} parent=5 // pred_fallthru
        _
    $region6: #{tpu_custom_call.1} parent=1 // loop_footer
      %s28 = sadd.s32 1, %s24
    $region7: #{tpu_custom_call.1} parent=1 // loop_footer_branch
      %23 = sbr.rel target = $region3
    $region8: #{tpu_custom_call.1} parent=1 // loop_exit
      _
    %790 = vsyncpa [#allocation3], 1
    %s791 = scalar_lea.sflag [#allocation3], 1
    %792 = vsyncpa %s791, 1
    %793 = vsyncpa [#allocation6], 1
    %s794 = scalar_lea.sflag [#allocation6], 1
    %795 = vsyncpa %s794, 1
    %796 = vsyncpa [#allocation4], 1
    %s797 = scalar_lea.sflag [#allocation4], 1
    %798 = vsyncpa %s797, 1

</llo_original>
